<compile_context>
chip_gen: v6e
topology: v6e:2x2x1
jax: 0.10.0
libtpu: 0.0.40
codegen_flags: <defaults>
</compile_context>

<pallas_src>
import functools

import jax
import jax.numpy as jnp
from jax.experimental import pallas as pl
from jax.experimental.pallas import tpu as pltpu


def _round_up(x, m):
    return ((x + m - 1) // m) * m


def _vmem_capacity_bytes():
    try:
        return int(pltpu.get_tpu_info().vmem_capacity_bytes)
    except Exception:
        return 64 * 1024 * 1024  # conservative default (v7x per-TC VMEM)


def _choose_tiles(nc, hw, dtype, vmem_cap):
    """Pick (row_block, hw_block) so the pipelined working set fits VMEM."""
    elem_bytes = jnp.dtype(dtype).itemsize
    # Sub-32-bit dtypes pack 2/4 rows per sublane; align row blocks to the
    # packing so Mosaic doesn't need padded tiles / relayout copies.
    row_align = 8 * max(1, 4 // elem_bytes)           # f32:8, bf16/f16:16, int8:32

    # Each pipelined input buffer targets ~1/6 of physical VMEM (double-buffered
    # -> ~1/3), big enough that the ~0.35us per-grid-step overhead stays small
    # even at v7x HBM bandwidth, while leaving ample scoped-VMEM headroom.
    block_budget = max(vmem_cap // 6, 1 << 20)
    max_block_elems = max(block_budget // elem_bytes, row_align * 128)

    if hw * row_align <= max_block_elems:
        hw_block = hw                                 # full extent (always legal)
    else:
        hw_block = max(128, (max_block_elems // (row_align * 128)) * 128)
        hw_block = min(hw_block, _round_up(hw, 128))

    # Row count sized against the *VMEM* footprint (lanes pad to 128):
    #   2 input buffers + lane-padded f32 accumulator + 2 lane-padded out buffers.
    hw_padded = _round_up(hw_block, 128)
    per_row = 2 * hw_padded * elem_bytes + 128 * 4 + 2 * 128 * elem_bytes
    vmem_target = max(vmem_cap // 3, 4 << 20)
    rows_fit = max(row_align, (vmem_target // per_row) // row_align * row_align)

    if rows_fit >= nc:
        # Whole row extent fits in one block.  Still split it into two aligned
        # blocks when possible: the row axis is "parallel", so on v7x this keeps
        # both TensorCores busy (a (1, K) grid would idle one core).
        if nc > row_align:
            row_block = _round_up(pl.cdiv(nc, 2), row_align)
        else:
            row_block = nc
    else:
        row_block = rows_fit
    return row_block, hw_block


def _global_avg_pool_kernel(x_ref, o_ref, acc_ref, *, inv_hw, rem_lanes):
    """Row-sum (row_block, hw_block) tiles, accumulating over the H*W grid axis."""
    k = pl.program_id(1)
    last = pl.num_programs(1) - 1

    @pl.when(k == 0)
    def _init():
        acc_ref[...] = jnp.zeros_like(acc_ref)

    def _accumulate(mask_lanes):
        x = x_ref[...].astype(jnp.float32)
        if mask_lanes:
            # Only the final partial H*W block pays masking cost; `rem_lanes` is
            # a compile-time constant so this is a single iota+cmp+select.
            lane = jax.lax.broadcasted_iota(jnp.int32, x.shape, dimension=1)
            x = jnp.where(lane < rem_lanes, x, 0.0)
        # NOTE: lane-sparse (rows, 1) accumulate.  The cross-lane XLU reduce is
        # only ~rows/8 ops per block vs ~rows*hw/1024 VPU strip-adds (<1%), and
        # the (rows, m, 128) reshape a lane-dense accumulator would need forces
        # a Mosaic relayout.  TODO(synk): revisit lane-dense acc if profiling
        # ever shows the reduce / acc traffic on the critical path.
        acc_ref[...] += jnp.sum(x, axis=-1, keepdims=True)

    if rem_lanes is None:
        _accumulate(False)
    else:
        @pl.when(k < last)
        def _full_blocks():
            _accumulate(False)

        @pl.when(k == last)
        def _partial_block():
            _accumulate(True)

    @pl.when(k == last)
    def _finalize():
        # Divide by the TRUE H*W (not the tile width).
        o_ref[...] = (acc_ref[...] * inv_hw).astype(o_ref.dtype)


def flatten_adaptive_avg_pool2d(x, *, small_input_fallback=True,
                                _row_block=None, _hw_block=None):
    """x: (N, C, H, W) -> (N, C), global average over the spatial dims."""
    N, C, H, W = x.shape
    NC, HW = N * C, H * W
    elem_bytes = jnp.dtype(x.dtype).itemsize

    if small_input_fallback and x.size * elem_bytes < (4 << 20):
        # Tiny problems: pallas_call launch + per-grid-step (~0.35us) overhead
        # dominates; XLA's fused reduce is already at roofline there.
        return jnp.mean(x, axis=(2, 3)).astype(x.dtype)

    x2 = x.reshape(NC, HW)
    vmem_cap = _vmem_capacity_bytes()
    row_block, hw_block = _choose_tiles(NC, HW, x.dtype, vmem_cap)
    if _row_block is not None:
        row_block = int(_row_block)
    if _hw_block is not None:
        hw_block = int(_hw_block)

    # (8, 128) BlockSpec rule: last two block dims must be full extent or
    # multiples of (8, 128).  Validate explicitly (matters for user overrides).
    if hw_block != HW and hw_block % 128 != 0:
        raise ValueError(f"hw_block={hw_block} must be a multiple of 128 or == {HW}")
    if row_block != NC and row_block % 8 != 0:
        raise ValueError(f"row_block={row_block} must be a multiple of 8 or == {NC}")

    grid = (pl.cdiv(NC, row_block), pl.cdiv(HW, hw_block))

    # Lanes valid in the final H*W block; None -> every block is full, no masking.
    rem_lanes = HW - (grid[1] - 1) * hw_block
    if rem_lanes == hw_block:
        rem_lanes = None

    # Scoped-VMEM accounting: the (row_block, 1) accumulator and output blocks
    # are padded to 128 lanes in VMEM; input/output blocks are double-buffered.
    row_pad = _round_up(row_block, 8)
    hw_pad = _round_up(hw_block, 128)
    needed = (2 * row_pad * hw_pad * elem_bytes   # double-buffered input block
              + row_pad * 128 * 4                 # f32 accumulator (lane-padded)
              + 2 * row_pad * 128 * elem_bytes    # double-buffered output block
              + (2 << 20))                        # slack
    vmem_ceiling = vmem_cap * 3 // 4
    if needed > vmem_ceiling:
        raise ValueError(
            f"tiles need ~{needed >> 20} MiB of scoped VMEM, over the "
            f"{vmem_ceiling >> 20} MiB ceiling; use smaller _row_block/_hw_block")
    vmem_limit = int(min(vmem_ceiling, max(needed, 16 << 20)))

    kernel = functools.partial(_global_avg_pool_kernel,
                               inv_hw=1.0 / HW, rem_lanes=rem_lanes)

    out = pl.pallas_call(
        kernel,
        out_shape=jax.ShapeDtypeStruct((NC, 1), x.dtype),
        grid_spec=pltpu.PrefetchScalarGridSpec(
            num_scalar_prefetch=0,
            grid=grid,
            in_specs=[pl.BlockSpec((row_block, hw_block), lambda i, k: (i, k))],
            out_specs=pl.BlockSpec((row_block, 1), lambda i, k: (i, 0)),
            scratch_shapes=[pltpu.VMEM((row_block, 1), jnp.float32)],
        ),
        compiler_params=pltpu.CompilerParams(
            dimension_semantics=("parallel", "arbitrary"),
            vmem_limit_bytes=vmem_limit,
        ),
    )(x2)

    return out.reshape(N, C)


if __name__ == "__main__":
    key = jax.random.PRNGKey(0)
    k1, k2, k3, k4 = jax.random.split(key, 4)

    # Case 1: module's nominal small shape (NCHW), auto tiling (single block).
    x1 = jax.random.normal(k1, (2, 4, 16, 16), dtype=jnp.float32)
    y1 = jax.block_until_ready(
        flatten_adaptive_avg_pool2d(x1, small_input_fallback=False))
    ref1 = jnp.mean(x1, axis=(2, 3))
    assert y1.shape == (2, 4)
    assert y1.dtype == x1.dtype
    assert jnp.allclose(y1, ref1, atol=1e-5, rtol=1e-5)

    # Case 2: forced multi-tile grid (3 row tiles x 2 H*W tiles, masked final
    # H*W block) to exercise the accumulator / last-block masking path.
    x2 = jax.random.normal(k2, (3, 8, 10, 16), dtype=jnp.float32)
    y2 = jax.block_until_ready(
        flatten_adaptive_avg_pool2d(x2, small_input_fallback=False,
                                    _row_block=8, _hw_block=128))
    assert y2.shape == (3, 8)
    assert jnp.allclose(y2, jnp.mean(x2, axis=(2, 3)), atol=1e-5, rtol=1e-5)

    # Case 3: partial trailing ROW block (NC=30 with 8-row tiles) to exercise
    # Pallas's masked output store for the remainder rows.
    x3 = jax.random.normal(k3, (3, 10, 8, 16), dtype=jnp.float32)
    y3 = jax.block_until_ready(
        flatten_adaptive_avg_pool2d(x3, small_input_fallback=False,
                                    _row_block=8))
    assert y3.shape == (3, 10)
    assert jnp.allclose(y3, jnp.mean(x3, axis=(2, 3)), atol=1e-5, rtol=1e-5)

    # Case 4: bf16 input (in-kernel f32 accumulation, bf16 store).
    x4 = jax.random.normal(k4, (2, 4, 16, 16), dtype=jnp.float32).astype(jnp.bfloat16)
    y4 = jax.block_until_ready(
        flatten_adaptive_avg_pool2d(x4, small_input_fallback=False))
    ref4 = jnp.mean(x4.astype(jnp.float32), axis=(2, 3))
    assert y4.dtype == jnp.bfloat16
    assert jnp.allclose(y4.astype(jnp.float32), ref4, atol=2e-2, rtol=2e-2)

    print("KERNEL_OK")
</pallas_src>

<mosaic_0001>
module attributes {stable_mosaic.version = 11 : i64} {
  func.func @_global_avg_pool_kernel(%arg0: i32, %arg1: i32, %arg2: memref<8x256xf32, #tpu.memory_space<vmem>>, %arg3: memref<8x1xf32, #tpu.memory_space<vmem>>, %arg4: memref<8x1xf32, #tpu.memory_space<vmem>>) attributes {dimension_semantics = [#tpu.dimension_semantics<parallel>, #tpu.dimension_semantics<arbitrary>], iteration_bounds = array<i64: 1, 1>, scalar_prefetch = 0 : i64, scratch_operands = 1 : i64, tpu.core_type = #tpu.core_type<tc>, window_params = [{transform_indices = @transform_0, window_bounds = array<i64: 8, 256>}, {transform_indices = @transform_1, window_bounds = array<i64: 8, 1>}]} {
    %c0_i32 = arith.constant 0 : i32
    %0 = arith.cmpi eq, %arg1, %c0_i32 : i32
    %1 = arith.extui %0 : i1 to i32
    %c0_i32_0 = arith.constant 0 : i32
    %2 = arith.cmpi ne, %1, %c0_i32_0 : i32
    scf.if %2 {
      %cst_8 = arith.constant 0.000000e+00 : f32
      %12 = vector.broadcast %cst_8 : f32 to vector<8x1xf32>
      %c0_9 = arith.constant 0 : index
      %c0_10 = arith.constant 0 : index
      %13 = vector.load %arg4[%c0_9, %c0_10] : memref<8x1xf32, #tpu.memory_space<vmem>>, vector<8x1xf32>
      tpu.vector_store %arg4[%c0_9, %c0_10], %12 {strides = array<i32>} : memref<8x1xf32, #tpu.memory_space<vmem>>, vector<8x1xf32>,
    } else {
    }
    %c0 = arith.constant 0 : index
    %c0_1 = arith.constant 0 : index
    %3 = vector.load %arg2[%c0, %c0_1] : memref<8x256xf32, #tpu.memory_space<vmem>>, vector<8x256xf32>
    %c0_2 = arith.constant 0 : index
    %c0_3 = arith.constant 0 : index
    %4 = vector.load %arg4[%c0_2, %c0_3] : memref<8x1xf32, #tpu.memory_space<vmem>>, vector<8x1xf32>
    %cst = arith.constant dense<0.000000e+00> : vector<8xf32>
    %5 = vector.multi_reduction <add>, %3, %cst [1] : vector<8x256xf32> to vector<8xf32>
    %6 = vector.shape_cast %5 : vector<8xf32> to vector<8x1xf32>
    %7 = arith.addf %4, %6 : vector<8x1xf32>
    %c0_4 = arith.constant 0 : index
    %c0_5 = arith.constant 0 : index
    %8 = vector.load %arg4[%c0_4, %c0_5] : memref<8x1xf32, #tpu.memory_space<vmem>>, vector<8x1xf32>
    tpu.vector_store %arg4[%c0_4, %c0_5], %7 {strides = array<i32>} : memref<8x1xf32, #tpu.memory_space<vmem>>, vector<8x1xf32>,
    %c0_i32_6 = arith.constant 0 : i32
    %9 = arith.cmpi eq, %arg1, %c0_i32_6 : i32
    %10 = arith.extui %9 : i1 to i32
    %c0_i32_7 = arith.constant 0 : i32
    %11 = arith.cmpi ne, %10, %c0_i32_7 : i32
    scf.if %11 {
      %c0_8 = arith.constant 0 : index
      %c0_9 = arith.constant 0 : index
      %12 = vector.load %arg4[%c0_8, %c0_9] : memref<8x1xf32, #tpu.memory_space<vmem>>, vector<8x1xf32>
      %cst_10 = arith.constant 3.906250e-03 : f32
      %13 = vector.broadcast %cst_10 : f32 to vector<8x1xf32>
      %14 = arith.mulf %12, %13 : vector<8x1xf32>
      %c0_11 = arith.constant 0 : index
      %c0_12 = arith.constant 0 : index
      %15 = vector.load %arg3[%c0_11, %c0_12] : memref<8x1xf32, #tpu.memory_space<vmem>>, vector<8x1xf32>
      tpu.vector_store %arg3[%c0_11, %c0_12], %14 {strides = array<i32>} : memref<8x1xf32, #tpu.memory_space<vmem>>, vector<8x1xf32>,
    } else {
    }
    return
  }
  func.func @transform_0(%arg0: i32, %arg1: i32) -> (i32, i32) {
    %c0_i32 = arith.constant 0 : i32
    return %arg0, %arg1 : i32, i32
  }
  func.func @transform_1(%arg0: i32, %arg1: i32) -> (i32, i32) {
    %c0_i32 = arith.constant 0 : i32
    %c0_i32_0 = arith.constant 0 : i32
    return %arg0, %c0_i32 : i32, i32
  }
}

</mosaic_0001>

<llo_original>
// kernel: tpu_custom_call.1
$region0: #{tpu_custom_call.1}
  #allocation0 [shape = 'u32[]', space=smem, size = 0x4, offset = 0x4, fixed_abs, tag = 'smem constant byte address 0x4 - core index']
  #allocation1 [shape = 'u32[144,128]{1,0:T(1,128)}', space=vmem, size = 0x12000, scoped, tag = 'internal scratch']
  #allocation2 [shape = 'f32[8,1]{1,0:T(8,128)}', space=vmem, size = 0x1000, scoped, tag = 'scratch operand']
  %s0 = inlined_call_operand.hbm [shape: f32[8,256], index: 0, kind: input, shape index: {}]
  %s1 = inlined_call_operand.vmem [shape: f32[8,1], index: 1, kind: output, shape index: {}]
  %s2 = sld [smem:[#allocation0]]
  $region26: #{tpu_custom_call.1} parent=0
    _
  %s4 = ssub.s32 1, %s2
  %s5 = scalar_select 0, %s4, %s2
  $region1: #{tpu_custom_call.1} parent=0
    #allocation3 [shape = 'u8[8192]{0}', space=vmem, size = 0x2000, scoped, tag = 'input window, operand 0, single buffered']
    #allocation4 [shape = 's32[1]{0}', space=sflag, size = 0x4, scoped, tag = 'scoped memory for tpu_custom_call.1']
    %6 = vsyncpa [#allocation4], 0
    // Predicated region
    $region2: #{tpu_custom_call.1} parent=1 // pred_check
      _
    $region3: #{tpu_custom_call.1} parent=1 // pred_check_branch
      %8 = sbr.rel (0) target = $region5
    $region4: #{tpu_custom_call.1} parent=1 // pred_region
      %s10 = ssub.s32 256, 256
      %11 = vsyncadd [#allocation4], %s10
      %s13 = sshll.u32 [#allocation3], 4
      %s14 = int_to_ptr.vmem [resolvable:$true] %s13
      %16 = dma.hbm_to_vmem [thread:$0]  %s0, 256, %s14, [#allocation4]
    $region5: #{tpu_custom_call.1} parent=1 // pred_fallthru
      _
    // Predicated region
    $region6: #{tpu_custom_call.1} parent=1 // pred_check
      _
    $region7: #{tpu_custom_call.1} parent=1 // pred_check_branch
      %18 = sbr.rel (0) target = $region9
    $region8: #{tpu_custom_call.1} parent=1 // pred_region
      %19 = dma.done [#allocation4], 256
    $region9: #{tpu_custom_call.1} parent=1 // pred_fallthru
      _
    %p20 = scmp.eq.s32.totalorder 0, 0
    // Predicated region
    $region10: #{tpu_custom_call.1} parent=1 // pred_check
      %p21 = pneg %p20
    $region11: #{tpu_custom_call.1} parent=1 // pred_check_branch
      %23 = sbr.rel (%p21) target = $region13
    $region12: #{tpu_custom_call.1} parent=1 // pred_region
      %vm24 = vcmask 7168
      %25 = vst.msk [vmem:[#allocation2] sm:$0xff] %vm24, 0.0
    $region13: #{tpu_custom_call.1} parent=1 // pred_fallthru
      _
    %v26 = vld [vmem:[#allocation3] sm:$0xff]
    %v27 = vld [vmem:[#allocation3 + $0x8] sm:$0xff]
    %v28 = vld [vmem:[#allocation2] sm:$0xff]
    %v29 = vadd.f32 %v26, %v27
    %30 = vadd.xlane.f32.xlu0 %v29
    %v31 = vpop.xlane.xlu0 %30
    %v32 = vadd.f32 %v28, %v31
    %vm33 = vcmask 7168
    %34 = vst.msk [vmem:[#allocation2] sm:$0xff] %vm33, %v32
    // Predicated region
    $region14: #{tpu_custom_call.1} parent=1 // pred_check
      %p35 = pneg %p20
    $region15: #{tpu_custom_call.1} parent=1 // pred_check_branch
      %37 = sbr.rel (%p35) target = $region17
    $region16: #{tpu_custom_call.1} parent=1 // pred_region
      %v38 = vld [vmem:[#allocation2] sm:$0xff]
      %v39 = vmul.f32 %v38, 0.00390625
      %40 = vst.msk [vmem:[%s1] sm:$0xff] %vm33, %v39
    $region17: #{tpu_custom_call.1} parent=1 // pred_fallthru
      _
    // Predicated region
    $region18: #{tpu_custom_call.1} parent=1 // pred_check
      _
    $region19: #{tpu_custom_call.1} parent=1 // pred_check_branch
      %42 = sbr.rel (0) target = $region21
    $region20: #{tpu_custom_call.1} parent=1 // pred_region
      _
    $region21: #{tpu_custom_call.1} parent=1 // pred_fallthru
      _
    // Predicated region
    $region22: #{tpu_custom_call.1} parent=1 // pred_check
      _
    $region23: #{tpu_custom_call.1} parent=1 // pred_check_branch
      %44 = sbr.rel (0) target = $region25
    $region24: #{tpu_custom_call.1} parent=1 // pred_region
      _
    $region25: #{tpu_custom_call.1} parent=1 // pred_fallthru
      _
    %45 = vsyncpa [#allocation4], 1

</llo_original>
